<compile_context>
chip_gen: v7x
topology: tpu7x:2x2x1
jax: 0.10.0
libtpu: 0.0.40
codegen_flags: <defaults>
</compile_context>

<pallas_src>
import jax
import jax.numpy as jnp
from jax.experimental import pallas as pl
from jax.experimental.pallas import tpu as pltpu

RANK = 4
OUT_LANES = 128  # lane-dense padded output width (true logits live in lanes [0:2])


def _decoder_kernel(x_ref, y_ref, wxf_ref, wyf_ref, wout_ref, bias_ref, out_ref):
    # x/y: (B, D*S) f32;  wxf/wyf: (D*S, R*D) bf16;  wout: (R*D, 128) bf16;
    # bias: (8, >=128) f32 (row0 = fx bias, row1 = fy bias, row2 = out bias);  out: (B, 128) f32.
    rd = wxf_ref.shape[1]

    xb = x_ref[...].astype(jnp.bfloat16)
    yb = y_ref[...].astype(jnp.bfloat16)

    # Conv (kernel_size == seq_len) folded with the LMF factor projection: one lane-dense
    # bf16 matmul per modality (K = D*S = 256, N = R*D = 128).
    fx = jnp.dot(xb, wxf_ref[...], preferred_element_type=jnp.float32) + bias_ref[0:1, :rd]
    fy = jnp.dot(yb, wyf_ref[...], preferred_element_type=jnp.float32) + bias_ref[1:2, :rd]

    # LMF elementwise fusion (kept in f32 on the VPU).
    prod = fx * fy                                                         # (B, R*D)

    # Rank reduction + fusion_bias + final Linear fused into one lane-dense matmul.
    out_ref[...] = (jnp.dot(prod.astype(jnp.bfloat16), wout_ref[...],
                            preferred_element_type=jnp.float32)
                    + bias_ref[2:3, :out_ref.shape[1]])                    # (B, 128)


def preprocess_params(params, emb_dim, seq_len):
    """One-time parameter packing (hoisted off the per-call hot path)."""
    D, S, R = emb_dim, seq_len, RANK
    f32 = jnp.float32

    # Conv1d weights: (out_ch, in_ch, k) = (D, D, S) acting on flattened (channel, time).
    wx = params["conv_x_w"].reshape(D, D * S).T.astype(f32)              # (D*S, D)
    wy = params["conv_y_w"].reshape(D, D * S).T.astype(f32)
    bx = params["conv_x_b"].reshape(1, D).astype(f32)
    by = params["conv_y_b"].reshape(1, D).astype(f32)

    # LMF factors: fold fusion_weights into the eeg side, pack rank into the lane dimension.
    fw = params["fusion_weights"].reshape(R).astype(f32)
    eeg = params["eeg_factor"].astype(f32) * fw[:, None, None]           # (R, D+1, D), pre-scaled
    nirs = params["nirs_factor"].astype(f32)
    fxw_p = jnp.transpose(eeg[:, 1:, :], (1, 0, 2)).reshape(D, R * D)    # (D, R*D) lane-packed
    fyw_p = jnp.transpose(nirs[:, 1:, :], (1, 0, 2)).reshape(D, R * D)
    fxb_p = eeg[:, 0, :].reshape(1, R * D)                               # "1"-row biases
    fyb_p = nirs[:, 0, :].reshape(1, R * D)

    # Fold the factor matmuls through the conv weights/biases:
    #   (x @ wx + bx) @ F + fb  ==  x @ (wx @ F) + (bx @ F + fb)
    wxf = wx @ fxw_p                                                      # (D*S, R*D)
    wyf = wy @ fyw_p
    bxf = bx @ fxw_p + fxb_p                                              # (1, R*D)
    byf = by @ fyw_p + fyb_p

    # Final Linear fused with the rank reduction: out = prod @ wout + bout (lane-padded to 128).
    fcw = params["fc_w"].T.astype(f32)                                    # (D, 2)
    fcw_pad = jnp.zeros((D, OUT_LANES), f32).at[:, :2].set(fcw)
    wout = jnp.tile(fcw_pad, (R, 1))                                      # (R*D, 128) = rank-sum + fc
    bout = (params["fusion_bias"].reshape(1, D).astype(f32) @ fcw
            + params["fc_b"].reshape(1, 2).astype(f32))                   # (1, 2)

    # Single f32 bias slab, one (8, lanes) tile: row0 = fx bias, row1 = fy bias, row2 = out bias.
    width = max(R * D, OUT_LANES)
    bias = (jnp.zeros((8, width), f32)
            .at[0, :R * D].set(bxf[0])
            .at[1, :R * D].set(byf[0])
            .at[2, :2].set(bout[0]))

    # Weight slabs in bf16 (halves weight DMA bytes; MXU accumulates in f32); bias stays f32.
    bf16 = jnp.bfloat16
    return {"wxf": wxf.astype(bf16), "wyf": wyf.astype(bf16),
            "wout": wout.astype(bf16), "bias": bias}


def multimodal_decoder(x, y, packed):
    """Hot path: x, y are (B, emb_dim, seq_len) f32 (PyTorch NCL layout); packed = preprocess_params(...).

    Returns a lane-padded (B, 128) array; the true logits are [:, :2] (slice in the consumer).
    """
    B, D, S = x.shape
    x_flat = x.reshape(B, D * S)     # contiguous row-major -> free bitcast
    y_flat = y.reshape(B, D * S)

    rd = packed["wxf"].shape[1]
    flops = (2 * 2 * B * (D * S) * rd          # two folded conv+factor matmuls
             + B * rd                          # elementwise fusion
             + 2 * B * rd * OUT_LANES)         # rank-reduce + fc matmul
    bytes_accessed = (4 * (x_flat.size + y_flat.size + B * OUT_LANES + packed["bias"].size)
                      + 2 * (packed["wxf"].size + packed["wyf"].size + packed["wout"].size))

    vmem = pl.BlockSpec(memory_space=pltpu.MemorySpace.VMEM)
    out_pad = pl.pallas_call(
        _decoder_kernel,
        out_shape=jax.ShapeDtypeStruct((B, OUT_LANES), jnp.float32),
        in_specs=[vmem] * 6,
        out_specs=vmem,
        cost_estimate=pl.CostEstimate(flops=flops, transcendentals=0,
                                      bytes_accessed=bytes_accessed),
    )(x_flat, y_flat, packed["wxf"], packed["wyf"], packed["wout"], packed["bias"])
    return out_pad


def _reference(x, y, params):
    """Pure-JAX f32 reference mirroring the PyTorch forward."""
    B, D, S = x.shape
    hx = jnp.einsum("bcs,ocs->bo", x, params["conv_x_w"]) + params["conv_x_b"]
    hy = jnp.einsum("bcs,ocs->bo", y, params["conv_y_w"]) + params["conv_y_b"]
    ones = jnp.ones((B, 1), jnp.float32)
    _x = jnp.concatenate([ones, hx], axis=1)             # (B, D+1)
    _y = jnp.concatenate([ones, hy], axis=1)
    fz_x = jnp.einsum("bi,rio->rbo", _x, params["eeg_factor"])
    fz_y = jnp.einsum("bi,rio->rbo", _y, params["nirs_factor"])
    fz = fz_x * fz_y                                      # (rank, B, D)
    out = jnp.einsum("r,rbo->bo", params["fusion_weights"].reshape(-1), fz) \
        + params["fusion_bias"].reshape(1, D)
    return out @ params["fc_w"].T + params["fc_b"].reshape(1, 2)


def _init_params(key, emb_dim, seq_len):
    ks = jax.random.split(key, 10)
    s = 0.05
    return {
        "conv_x_w": s * jax.random.normal(ks[0], (emb_dim, emb_dim, seq_len), jnp.float32),
        "conv_x_b": s * jax.random.normal(ks[1], (emb_dim,), jnp.float32),
        "conv_y_w": s * jax.random.normal(ks[2], (emb_dim, emb_dim, seq_len), jnp.float32),
        "conv_y_b": s * jax.random.normal(ks[3], (emb_dim,), jnp.float32),
        "eeg_factor": s * jax.random.normal(ks[4], (RANK, emb_dim + 1, emb_dim), jnp.float32),
        "nirs_factor": s * jax.random.normal(ks[5], (RANK, emb_dim + 1, emb_dim), jnp.float32),
        "fusion_weights": s * jax.random.normal(ks[6], (1, RANK), jnp.float32),
        "fusion_bias": s * jax.random.normal(ks[7], (1, emb_dim), jnp.float32),
        "fc_w": s * jax.random.normal(ks[8], (2, emb_dim), jnp.float32),
        "fc_b": s * jax.random.normal(ks[9], (2,), jnp.float32),
    }


if __name__ == "__main__":
    # B=8 fills the f32 sublanes and amortizes the per-call weight DMA / launch overhead.
    B, EMB_DIM, SEQ_LEN = 8, 32, 8

    key = jax.random.PRNGKey(0)
    kx, ky, kp = jax.random.split(key, 3)
    x = jax.random.normal(kx, (B, EMB_DIM, SEQ_LEN), jnp.float32)
    y = jax.random.normal(ky, (B, EMB_DIM, SEQ_LEN), jnp.float32)
    params = _init_params(kp, EMB_DIM, SEQ_LEN)

    # One-time parameter packing (off the per-call hot path).
    packed = preprocess_params(params, EMB_DIM, SEQ_LEN)
    packed = jax.tree_util.tree_map(jax.block_until_ready, packed)

    out_pad = multimodal_decoder(x, y, packed)
    out_pad = jax.block_until_ready(out_pad)
    out = out_pad[:, :2]     # consumer-side slice of the lane-padded output

    ref = _reference(x, y, params)
    assert out.shape == (B, 2), out.shape
    # Tolerance accounts for the bf16 weight slabs (reference is full f32).
    assert jnp.allclose(out, ref, atol=3e-3, rtol=3e-3), (out, ref)

    print("KERNEL_OK")
</pallas_src>

<mosaic_0001>
module attributes {stable_mosaic.version = 11 : i64} {
  func.func @_decoder_kernel(%arg0: memref<8x256xf32, #tpu.memory_space<vmem>>, %arg1: memref<8x256xf32, #tpu.memory_space<vmem>>, %arg2: memref<256x128xbf16, #tpu.memory_space<vmem>>, %arg3: memref<256x128xbf16, #tpu.memory_space<vmem>>, %arg4: memref<128x128xbf16, #tpu.memory_space<vmem>>, %arg5: memref<8x128xf32, #tpu.memory_space<vmem>>, %arg6: memref<8x128xf32, #tpu.memory_space<vmem>>) attributes {dimension_semantics = [], scalar_prefetch = 0 : i64, scratch_operands = 0 : i64, tpu.core_type = #tpu.core_type<tc>} {
    %c0 = arith.constant 0 : index
    %c0_0 = arith.constant 0 : index
    %0 = vector.load %arg0[%c0, %c0_0] : memref<8x256xf32, #tpu.memory_space<vmem>>, vector<8x256xf32>
    %1 = arith.truncf %0 : vector<8x256xf32> to vector<8x256xbf16>
    %c0_1 = arith.constant 0 : index
    %c0_2 = arith.constant 0 : index
    %2 = vector.load %arg1[%c0_1, %c0_2] : memref<8x256xf32, #tpu.memory_space<vmem>>, vector<8x256xf32>
    %3 = arith.truncf %2 : vector<8x256xf32> to vector<8x256xbf16>
    %c0_3 = arith.constant 0 : index
    %c0_4 = arith.constant 0 : index
    %4 = vector.load %arg2[%c0_3, %c0_4] : memref<256x128xbf16, #tpu.memory_space<vmem>>, vector<256x128xbf16>
    %cst = arith.constant dense<0.000000e+00> : vector<8x128xf32>
    %5 = tpu.matmul %1, %4, %cst {dimension_numbers = #tpu.dot_dimension_numbers<[1], [0], [0], [1], [0, 0, 1, 1], [], []>} : vector<8x256xbf16>, vector<256x128xbf16>, vector<8x128xf32> -> vector<8x128xf32>
    %c0_5 = arith.constant 0 : index
    %c0_6 = arith.constant 0 : index
    %6 = vector.load %arg5[%c0_5, %c0_6] : memref<8x128xf32, #tpu.memory_space<vmem>>, vector<1x128xf32>
    %7 = vector.broadcast %6 : vector<1x128xf32> to vector<8x128xf32>
    %8 = arith.addf %5, %7 : vector<8x128xf32>
    %c0_7 = arith.constant 0 : index
    %c0_8 = arith.constant 0 : index
    %9 = vector.load %arg3[%c0_7, %c0_8] : memref<256x128xbf16, #tpu.memory_space<vmem>>, vector<256x128xbf16>
    %cst_9 = arith.constant dense<0.000000e+00> : vector<8x128xf32>
    %10 = tpu.matmul %3, %9, %cst_9 {dimension_numbers = #tpu.dot_dimension_numbers<[1], [0], [0], [1], [0, 0, 1, 1], [], []>} : vector<8x256xbf16>, vector<256x128xbf16>, vector<8x128xf32> -> vector<8x128xf32>
    %c1 = arith.constant 1 : index
    %c0_10 = arith.constant 0 : index
    %11 = vector.load %arg5[%c1, %c0_10] : memref<8x128xf32, #tpu.memory_space<vmem>>, vector<1x128xf32>
    %12 = vector.broadcast %11 : vector<1x128xf32> to vector<8x128xf32>
    %13 = arith.addf %10, %12 : vector<8x128xf32>
    %14 = arith.mulf %8, %13 : vector<8x128xf32>
    %15 = arith.truncf %14 : vector<8x128xf32> to vector<8x128xbf16>
    %c0_11 = arith.constant 0 : index
    %c0_12 = arith.constant 0 : index
    %16 = vector.load %arg4[%c0_11, %c0_12] : memref<128x128xbf16, #tpu.memory_space<vmem>>, vector<128x128xbf16>
    %cst_13 = arith.constant dense<0.000000e+00> : vector<8x128xf32>
    %17 = tpu.matmul %15, %16, %cst_13 {dimension_numbers = #tpu.dot_dimension_numbers<[1], [0], [0], [1], [0, 0, 1, 1], [], []>} : vector<8x128xbf16>, vector<128x128xbf16>, vector<8x128xf32> -> vector<8x128xf32>
    %c2 = arith.constant 2 : index
    %c0_14 = arith.constant 0 : index
    %18 = vector.load %arg5[%c2, %c0_14] : memref<8x128xf32, #tpu.memory_space<vmem>>, vector<1x128xf32>
    %19 = vector.broadcast %18 : vector<1x128xf32> to vector<8x128xf32>
    %20 = arith.addf %17, %19 : vector<8x128xf32>
    %c0_15 = arith.constant 0 : index
    %c0_16 = arith.constant 0 : index
    %21 = vector.load %arg6[%c0_15, %c0_16] : memref<8x128xf32, #tpu.memory_space<vmem>>, vector<8x128xf32>
    tpu.vector_store %arg6[%c0_15, %c0_16], %20 {strides = array<i32>} : memref<8x128xf32, #tpu.memory_space<vmem>>, vector<8x128xf32>,
    return
  }
}

</mosaic_0001>

<llo_original>
// kernel: tpu_custom_call.1
$region0: #{tpu_custom_call.1}
  #allocation0 [shape = 'u32[]', space=smem, size = 0x4, offset = 0x4, fixed_abs, tag = 'smem constant byte address 0x4 - core index']
  #allocation1 [shape = 'u32[144,128]{1,0:T(1,128)}', space=vmem, size = 0x12000, scoped, tag = 'internal scratch']
  %s0 = inlined_call_operand.hbm [shape: f32[8,256], index: 0, kind: input, shape index: {}]
  %s1 = inlined_call_operand.hbm [shape: f32[8,256], index: 1, kind: input, shape index: {}]
  %s2 = inlined_call_operand.hbm [shape: bf16[256,128], index: 2, kind: input, shape index: {}]
  %s3 = inlined_call_operand.hbm [shape: bf16[256,128], index: 3, kind: input, shape index: {}]
  %s4 = inlined_call_operand.hbm [shape: bf16[128,128], index: 4, kind: input, shape index: {}]
  %s5 = inlined_call_operand.vmem [shape: f32[8,128], index: 5, kind: input, shape index: {}]
  %s6 = inlined_call_operand.hbm [shape: f32[8,128], index: 6, kind: output, shape index: {}]
  %s7 = sld [smem:[#allocation0]]
  $region54: #{tpu_custom_call.1} parent=0
    _
  %s9 = ssub.s32 1, %s7
  %s10 = scalar_select 0, %s9, %s7
  $region1: #{tpu_custom_call.1} parent=0
    #allocation2 [shape = 'u8[8192]{0}', space=vmem, size = 0x2000, scoped, tag = 'input window, operand 0, single buffered']
    #allocation3 [shape = 's32[1]{0}', space=sflag, size = 0x4, scoped, tag = 'scoped memory for tpu_custom_call.1']
    #allocation4 [shape = 's32[1]{0}', space=sflag, size = 0x4, scoped, tag = 'scoped memory for tpu_custom_call.1']
    #allocation5 [shape = 'u8[8192]{0}', space=vmem, size = 0x2000, scoped, tag = 'input window, operand 1, single buffered']
    #allocation6 [shape = 's32[1]{0}', space=sflag, size = 0x4, scoped, tag = 'scoped memory for tpu_custom_call.1']
    #allocation7 [shape = 'u8[65536]{0}', space=vmem, size = 0x10000, scoped, tag = 'input window, operand 2, single buffered']
    #allocation8 [shape = 'u8[65536]{0}', space=vmem, size = 0x10000, scoped, tag = 'input window, operand 3, single buffered']
    #allocation9 [shape = 's32[1]{0}', space=sflag, size = 0x4, scoped, tag = 'scoped memory for tpu_custom_call.1']
    #allocation10 [shape = 'u8[32768]{0}', space=vmem, size = 0x8000, scoped, tag = 'input window, operand 4, single buffered']
    #allocation11 [shape = 'u8[4096]{0}', space=vmem, size = 0x1000, scoped, tag = 'output window, operand 0, single buffered']
    %11 = vsyncpa [#allocation3], 0
    %12 = vsyncpa [#allocation6], 0
    %13 = vsyncpa [#allocation9], 0
    %14 = vsyncpa [#allocation4], 0
    // Predicated region
    $region2: #{tpu_custom_call.1} parent=1 // pred_check
      _
    $region3: #{tpu_custom_call.1} parent=1 // pred_check_branch
      %16 = sbr.rel (0) target = $region5
    $region4: #{tpu_custom_call.1} parent=1 // pred_region
      %s18 = ssub.s32 256, 256
      %19 = vsyncadd [#allocation3], %s18
      %s21 = sshll.u32 [#allocation2], 4
      %s22 = int_to_ptr.vmem [resolvable:$true] %s21
      %24 = dma.hbm_to_vmem [thread:$0]  %s0, 256, %s22, [#allocation3]
    $region5: #{tpu_custom_call.1} parent=1 // pred_fallthru
      _
    // Predicated region
    $region6: #{tpu_custom_call.1} parent=1 // pred_check
      _
    $region7: #{tpu_custom_call.1} parent=1 // pred_check_branch
      %26 = sbr.rel (0) target = $region9
    $region8: #{tpu_custom_call.1} parent=1 // pred_region
      %s28 = ssub.s32 256, 256
      %29 = vsyncadd [#allocation6], %s28
      %s31 = sshll.u32 [#allocation5], 4
      %s32 = int_to_ptr.vmem [resolvable:$true] %s31
      %34 = dma.hbm_to_vmem [thread:$0]  %s1, 256, %s32, [#allocation6]
    $region9: #{tpu_custom_call.1} parent=1 // pred_fallthru
      _
    // Predicated region
    $region10: #{tpu_custom_call.1} parent=1 // pred_check
      _
    $region11: #{tpu_custom_call.1} parent=1 // pred_check_branch
      %36 = sbr.rel (0) target = $region13
    $region12: #{tpu_custom_call.1} parent=1 // pred_region
      %s38 = ssub.s32 2048, 2048
      %39 = vsyncadd [#allocation6], %s38
      %s40 = sshll.u32 [#allocation7], 4
      %s41 = int_to_ptr.vmem [resolvable:$true] %s40
      %46 = dma.hbm_to_vmem [thread:$0]  %s2, 2048, %s41, [#allocation6], 64, 64, 4
    $region13: #{tpu_custom_call.1} parent=1 // pred_fallthru
      _
    // Predicated region
    $region14: #{tpu_custom_call.1} parent=1 // pred_check
      _
    $region15: #{tpu_custom_call.1} parent=1 // pred_check_branch
      %48 = sbr.rel (0) target = $region17
    $region16: #{tpu_custom_call.1} parent=1 // pred_region
      %s50 = ssub.s32 2048, 2048
      %51 = vsyncadd [#allocation9], %s50
      %s52 = sshll.u32 [#allocation8], 4
      %s53 = int_to_ptr.vmem [resolvable:$true] %s52
      %58 = dma.hbm_to_vmem [thread:$0]  %s3, 2048, %s53, [#allocation9], 64, 64, 4
    $region17: #{tpu_custom_call.1} parent=1 // pred_fallthru
      _
    // Predicated region
    $region18: #{tpu_custom_call.1} parent=1 // pred_check
      _
    $region19: #{tpu_custom_call.1} parent=1 // pred_check_branch
      %60 = sbr.rel (0) target = $region21
    $region20: #{tpu_custom_call.1} parent=1 // pred_region
      %s62 = ssub.s32 1024, 1024
      %63 = vsyncadd [#allocation9], %s62
      %s64 = sshll.u32 [#allocation10], 4
      %s65 = int_to_ptr.vmem [resolvable:$true] %s64
      %70 = dma.hbm_to_vmem [thread:$0]  %s4, 1024, %s65, [#allocation9], 64, 64, 4
    $region21: #{tpu_custom_call.1} parent=1 // pred_fallthru
      _
    // Predicated region
    $region22: #{tpu_custom_call.1} parent=1 // pred_check
      _
    $region23: #{tpu_custom_call.1} parent=1 // pred_check_branch
      %72 = sbr.rel (0) target = $region25
    $region24: #{tpu_custom_call.1} parent=1 // pred_region
      _
    $region25: #{tpu_custom_call.1} parent=1 // pred_fallthru
      _
    // Predicated region
    $region26: #{tpu_custom_call.1} parent=1 // pred_check
      _
    $region27: #{tpu_custom_call.1} parent=1 // pred_check_branch
      %74 = sbr.rel (0) target = $region29
    $region28: #{tpu_custom_call.1} parent=1 // pred_region
      %75 = dma.done [#allocation3], 256
    $region29: #{tpu_custom_call.1} parent=1 // pred_fallthru
      _
    // Predicated region
    $region30: #{tpu_custom_call.1} parent=1 // pred_check
      _
    $region31: #{tpu_custom_call.1} parent=1 // pred_check_branch
      %77 = sbr.rel (0) target = $region33
    $region32: #{tpu_custom_call.1} parent=1 // pred_region
      %78 = dma.done [#allocation6], 256
    $region33: #{tpu_custom_call.1} parent=1 // pred_fallthru
      _
    // Predicated region
    $region34: #{tpu_custom_call.1} parent=1 // pred_check
      _
    $region35: #{tpu_custom_call.1} parent=1 // pred_check_branch
      %80 = sbr.rel (0) target = $region37
    $region36: #{tpu_custom_call.1} parent=1 // pred_region
      %81 = dma.done [#allocation6], 2048
    $region37: #{tpu_custom_call.1} parent=1 // pred_fallthru
      _
    // Predicated region
    $region38: #{tpu_custom_call.1} parent=1 // pred_check
      _
    $region39: #{tpu_custom_call.1} parent=1 // pred_check_branch
      %83 = sbr.rel (0) target = $region41
    $region40: #{tpu_custom_call.1} parent=1 // pred_region
      %84 = dma.done [#allocation9], 2048
    $region41: #{tpu_custom_call.1} parent=1 // pred_fallthru
      _
    // Predicated region
    $region42: #{tpu_custom_call.1} parent=1 // pred_check
      _
    $region43: #{tpu_custom_call.1} parent=1 // pred_check_branch
      %86 = sbr.rel (0) target = $region45
    $region44: #{tpu_custom_call.1} parent=1 // pred_region
      %87 = dma.done [#allocation9], 1024
    $region45: #{tpu_custom_call.1} parent=1 // pred_fallthru
      _
    %v89 = vld [vmem:[#allocation2] sm:$0xff]
    %v90 = vld [vmem:[#allocation2 + $0x8] sm:$0xff]
    %v91 = vpack.c.bf16 %v89, %v89
    %v92 = vpack.c.bf16 %v90, %v90
    %v93 = vld [vmem:[#allocation5] sm:$0xff]
    %v94 = vld [vmem:[#allocation5 + $0x8] sm:$0xff]
    %v95 = vpack.c.bf16 %v93, %v93
    %v96 = vpack.c.bf16 %v94, %v94
    %v97 = vld [vmem:[#allocation7] sm:$0xf]
    %v98 = vld [vmem:[#allocation7 + $0x4] sm:$0xf]
    %v99 = vld [vmem:[#allocation7 + $0x8] sm:$0xf]
    %v100 = vld [vmem:[#allocation7 + $0xc] sm:$0xf]
    %v101 = vld [vmem:[#allocation7 + $0x10] sm:$0xf]
    %v102 = vld [vmem:[#allocation7 + $0x14] sm:$0xf]
    %v103 = vld [vmem:[#allocation7 + $0x18] sm:$0xf]
    %v104 = vld [vmem:[#allocation7 + $0x1c] sm:$0xf]
    %v105 = vld [vmem:[#allocation7 + $0x20] sm:$0xf]
    %v106 = vld [vmem:[#allocation7 + $0x24] sm:$0xf]
    %v107 = vld [vmem:[#allocation7 + $0x28] sm:$0xf]
    %v108 = vld [vmem:[#allocation7 + $0x2c] sm:$0xf]
    %v109 = vld [vmem:[#allocation7 + $0x30] sm:$0xf]
    %v110 = vld [vmem:[#allocation7 + $0x34] sm:$0xf]
    %v111 = vld [vmem:[#allocation7 + $0x38] sm:$0xf]
    %v112 = vld [vmem:[#allocation7 + $0x3c] sm:$0xf]
    %v113 = vld [vmem:[#allocation7 + $0x40] sm:$0xf]
    %v114 = vld [vmem:[#allocation7 + $0x44] sm:$0xf]
    %v115 = vld [vmem:[#allocation7 + $0x48] sm:$0xf]
    %v116 = vld [vmem:[#allocation7 + $0x4c] sm:$0xf]
    %v117 = vld [vmem:[#allocation7 + $0x50] sm:$0xf]
    %v118 = vld [vmem:[#allocation7 + $0x54] sm:$0xf]
    %v119 = vld [vmem:[#allocation7 + $0x58] sm:$0xf]
    %v120 = vld [vmem:[#allocation7 + $0x5c] sm:$0xf]
    %v121 = vld [vmem:[#allocation7 + $0x60] sm:$0xf]
    %v122 = vld [vmem:[#allocation7 + $0x64] sm:$0xf]
    %v123 = vld [vmem:[#allocation7 + $0x68] sm:$0xf]
    %v124 = vld [vmem:[#allocation7 + $0x6c] sm:$0xf]
    %v125 = vld [vmem:[#allocation7 + $0x70] sm:$0xf]
    %v126 = vld [vmem:[#allocation7 + $0x74] sm:$0xf]
    %v127 = vld [vmem:[#allocation7 + $0x78] sm:$0xf]
    %v128 = vld [vmem:[#allocation7 + $0x7c] sm:$0xf]
    %v129 = vld [vmem:[%s5] sm:$0x1]
    %v130 = vlaneseq
    %v131 = vshrl.u32 %v130, 7
    %v132 = vsub.s32 0, %v131
    %v133 = vrot.slane %v129, %v132
    %v166 = vunpack.c.l.b16 %v97
    %v167 = vunpack.c.l.b16 %v98
    %v168 = vunpack.c.l.b16 %v99
    %v169 = vunpack.c.l.b16 %v100
    %v170 = vunpack.c.l.b16 %v101
    %v171 = vunpack.c.l.b16 %v102
    %v172 = vunpack.c.l.b16 %v103
    %v173 = vunpack.c.l.b16 %v104
    %v174 = vunpack.c.l.b16 %v105
    %v175 = vunpack.c.l.b16 %v106
    %v176 = vunpack.c.l.b16 %v107
    %v177 = vunpack.c.l.b16 %v108
    %v178 = vunpack.c.l.b16 %v109
    %v179 = vunpack.c.l.b16 %v110
    %v180 = vunpack.c.l.b16 %v111
    %v181 = vunpack.c.l.b16 %v112
    %v182 = vunpack.c.l.b16 %v113
    %v183 = vunpack.c.l.b16 %v114
    %v184 = vunpack.c.l.b16 %v115
    %v185 = vunpack.c.l.b16 %v116
    %v186 = vunpack.c.l.b16 %v117
    %v187 = vunpack.c.l.b16 %v118
    %v188 = vunpack.c.l.b16 %v119
    %v189 = vunpack.c.l.b16 %v120
    %v190 = vunpack.c.l.b16 %v121
    %v191 = vunpack.c.l.b16 %v122
    %v192 = vunpack.c.l.b16 %v123
    %v193 = vunpack.c.l.b16 %v124
    %v194 = vunpack.c.l.b16 %v125
    %v195 = vunpack.c.l.b16 %v126
    %v196 = vunpack.c.l.b16 %v127
    %v197 = vunpack.c.l.b16 %v128
    %v198 = vpack.c.b16 %v167, %v166
    %v199 = vpack.c.b16 %v169, %v168
    %v200 = vpack.c.b16 %v171, %v170
    %v201 = vpack.c.b16 %v173, %v172
    %v202 = vpack.c.b16 %v175, %v174
    %v203 = vpack.c.b16 %v177, %v176
    %v204 = vpack.c.b16 %v179, %v178
    %v205 = vpack.c.b16 %v181, %v180
    %v206 = vpack.c.b16 %v183, %v182
    %v207 = vpack.c.b16 %v185, %v184
    %v208 = vpack.c.b16 %v187, %v186
    %v209 = vpack.c.b16 %v189, %v188
    %v210 = vpack.c.b16 %v191, %v190
    %v211 = vpack.c.b16 %v193, %v192
    %v212 = vpack.c.b16 %v195, %v194
    %v213 = vpack.c.b16 %v197, %v196
    %230 = vmatprep.subr.bf16.mxu0 0
    %231 = vmatpush1.bf16.msra.mxu0 %v198
    %232 = vmatprep.subr.bf16.mxu0 0
    %233 = vmatpush1.bf16.msra.mxu0 %v199
    %234 = vmatprep.subr.bf16.mxu0 0
    %235 = vmatpush1.bf16.msra.mxu0 %v200
    %236 = vmatprep.subr.bf16.mxu0 0
    %237 = vmatpush1.bf16.msra.mxu0 %v201
    %238 = vmatprep.subr.bf16.mxu0 0
    %239 = vmatpush1.bf16.msra.mxu0 %v202
    %240 = vmatprep.subr.bf16.mxu0 0
    %241 = vmatpush1.bf16.msra.mxu0 %v203
    %242 = vmatprep.subr.bf16.mxu0 0
    %243 = vmatpush1.bf16.msra.mxu0 %v204
    %244 = vmatprep.subr.bf16.mxu0 0
    %245 = vmatpush1.bf16.msra.mxu0 %v205
    %246 = vmatprep.subr.bf16.mxu0 0
    %247 = vmatpush1.bf16.msra.mxu0 %v206
    %248 = vmatprep.subr.bf16.mxu0 0
    %249 = vmatpush1.bf16.msra.mxu0 %v207
    %250 = vmatprep.subr.bf16.mxu0 0
    %251 = vmatpush1.bf16.msra.mxu0 %v208
    %252 = vmatprep.subr.bf16.mxu0 0
    %253 = vmatpush1.bf16.msra.mxu0 %v209
    %254 = vmatprep.subr.bf16.mxu0 0
    %255 = vmatpush1.bf16.msra.mxu0 %v210
    %256 = vmatprep.subr.bf16.mxu0 0
    %257 = vmatpush1.bf16.msra.mxu0 %v211
    %258 = vmatprep.subr.bf16.mxu0 0
    %259 = vmatpush1.bf16.msra.mxu0 %v212
    %260 = vmatprep.subr.bf16.mxu0 0
    %261 = vmatpush1.bf16.msra.mxu0 %v213
    %262 = vmatprep.mubr.bf16.mxu0 %v92
    %263 = vmatmul.mubr.bf16.gmra.mrb[0].mxu0 %v91
    %v264 = vpop.f32.mrb[0].mxu0
    %v265 = vadd.f32 %v133, %v264
    %v266 = vpop.f32.mrb[0].mxu0
    %v267 = vpop.f32.mrb[0].mxu0
    %v268 = vpop.f32.mrb[0].mxu0
    %269 = vdwg.mxu0
    %v270 = vld [vmem:[#allocation8] sm:$0xf]
    %v271 = vld [vmem:[#allocation8 + $0x4] sm:$0xf]
    %v272 = vld [vmem:[#allocation8 + $0x8] sm:$0xf]
    %v273 = vld [vmem:[#allocation8 + $0xc] sm:$0xf]
    %v274 = vld [vmem:[#allocation8 + $0x10] sm:$0xf]
    %v275 = vld [vmem:[#allocation8 + $0x14] sm:$0xf]
    %v276 = vld [vmem:[#allocation8 + $0x18] sm:$0xf]
    %v277 = vld [vmem:[#allocation8 + $0x1c] sm:$0xf]
    %v278 = vld [vmem:[#allocation8 + $0x20] sm:$0xf]
    %v279 = vld [vmem:[#allocation8 + $0x24] sm:$0xf]
    %v280 = vld [vmem:[#allocation8 + $0x28] sm:$0xf]
    %v281 = vld [vmem:[#allocation8 + $0x2c] sm:$0xf]
    %v282 = vld [vmem:[#allocation8 + $0x30] sm:$0xf]
    %v283 = vld [vmem:[#allocation8 + $0x34] sm:$0xf]
    %v284 = vld [vmem:[#allocation8 + $0x38] sm:$0xf]
    %v285 = vld [vmem:[#allocation8 + $0x3c] sm:$0xf]
    %v286 = vld [vmem:[#allocation8 + $0x40] sm:$0xf]
    %v287 = vld [vmem:[#allocation8 + $0x44] sm:$0xf]
    %v288 = vld [vmem:[#allocation8 + $0x48] sm:$0xf]
    %v289 = vld [vmem:[#allocation8 + $0x4c] sm:$0xf]
    %v290 = vld [vmem:[#allocation8 + $0x50] sm:$0xf]
    %v291 = vld [vmem:[#allocation8 + $0x54] sm:$0xf]
    %v292 = vld [vmem:[#allocation8 + $0x58] sm:$0xf]
    %v293 = vld [vmem:[#allocation8 + $0x5c] sm:$0xf]
    %v294 = vld [vmem:[#allocation8 + $0x60] sm:$0xf]
    %v295 = vld [vmem:[#allocation8 + $0x64] sm:$0xf]
    %v296 = vld [vmem:[#allocation8 + $0x68] sm:$0xf]
    %v297 = vld [vmem:[#allocation8 + $0x6c] sm:$0xf]
    %v298 = vld [vmem:[#allocation8 + $0x70] sm:$0xf]
    %v299 = vld [vmem:[#allocation8 + $0x74] sm:$0xf]
    %v300 = vld [vmem:[#allocation8 + $0x78] sm:$0xf]
    %v301 = vld [vmem:[#allocation8 + $0x7c] sm:$0xf]
    %v302 = vld [vmem:[%s5 + $0x1] sm:$0x1]
    %v303 = vlaneseq
    %v304 = vshrl.u32 %v303, 7
    %v305 = vsub.s32 0, %v304
    %v306 = vrot.slane %v302, %v305
    %v339 = vunpack.c.l.b16 %v270
    %v340 = vunpack.c.l.b16 %v271
    %v341 = vunpack.c.l.b16 %v272
    %v342 = vunpack.c.l.b16 %v273
    %v343 = vunpack.c.l.b16 %v274
    %v344 = vunpack.c.l.b16 %v275
    %v345 = vunpack.c.l.b16 %v276
    %v346 = vunpack.c.l.b16 %v277
    %v347 = vunpack.c.l.b16 %v278
    %v348 = vunpack.c.l.b16 %v279
    %v349 = vunpack.c.l.b16 %v280
    %v350 = vunpack.c.l.b16 %v281
    %v351 = vunpack.c.l.b16 %v282
    %v352 = vunpack.c.l.b16 %v283
    %v353 = vunpack.c.l.b16 %v284
    %v354 = vunpack.c.l.b16 %v285
    %v355 = vunpack.c.l.b16 %v286
    %v356 = vunpack.c.l.b16 %v287
    %v357 = vunpack.c.l.b16 %v288
    %v358 = vunpack.c.l.b16 %v289
    %v359 = vunpack.c.l.b16 %v290
    %v360 = vunpack.c.l.b16 %v291
    %v361 = vunpack.c.l.b16 %v292
    %v362 = vunpack.c.l.b16 %v293
    %v363 = vunpack.c.l.b16 %v294
    %v364 = vunpack.c.l.b16 %v295
    %v365 = vunpack.c.l.b16 %v296
    %v366 = vunpack.c.l.b16 %v297
    %v367 = vunpack.c.l.b16 %v298
    %v368 = vunpack.c.l.b16 %v299
    %v369 = vunpack.c.l.b16 %v300
    %v370 = vunpack.c.l.b16 %v301
    %v371 = vpack.c.b16 %v340, %v339
    %v372 = vpack.c.b16 %v342, %v341
    %v373 = vpack.c.b16 %v344, %v343
    %v374 = vpack.c.b16 %v346, %v345
    %v375 = vpack.c.b16 %v348, %v347
    %v376 = vpack.c.b16 %v350, %v349
    %v377 = vpack.c.b16 %v352, %v351
    %v378 = vpack.c.b16 %v354, %v353
    %v379 = vpack.c.b16 %v356, %v355
    %v380 = vpack.c.b16 %v358, %v357
    %v381 = vpack.c.b16 %v360, %v359
    %v382 = vpack.c.b16 %v362, %v361
    %v383 = vpack.c.b16 %v364, %v363
    %v384 = vpack.c.b16 %v366, %v365
    %v385 = vpack.c.b16 %v368, %v367
    %v386 = vpack.c.b16 %v370, %v369
    %403 = vmatprep.subr.bf16.mxu0 0
    %404 = vmatpush1.bf16.msra.mxu0 %v371
    %405 = vmatprep.subr.bf16.mxu0 0
    %406 = vmatpush1.bf16.msra.mxu0 %v372
    %407 = vmatprep.subr.bf16.mxu0 0
    %408 = vmatpush1.bf16.msra.mxu0 %v373
    %409 = vmatprep.subr.bf16.mxu0 0
    %410 = vmatpush1.bf16.msra.mxu0 %v374
    %411 = vmatprep.subr.bf16.mxu0 0
    %412 = vmatpush1.bf16.msra.mxu0 %v375
    %413 = vmatprep.subr.bf16.mxu0 0
    %414 = vmatpush1.bf16.msra.mxu0 %v376
    %415 = vmatprep.subr.bf16.mxu0 0
    %416 = vmatpush1.bf16.msra.mxu0 %v377
    %417 = vmatprep.subr.bf16.mxu0 0
    %418 = vmatpush1.bf16.msra.mxu0 %v378
    %419 = vmatprep.subr.bf16.mxu0 0
    %420 = vmatpush1.bf16.msra.mxu0 %v379
    %421 = vmatprep.subr.bf16.mxu0 0
    %422 = vmatpush1.bf16.msra.mxu0 %v380
    %423 = vmatprep.subr.bf16.mxu0 0
    %424 = vmatpush1.bf16.msra.mxu0 %v381
    %425 = vmatprep.subr.bf16.mxu0 0
    %426 = vmatpush1.bf16.msra.mxu0 %v382
    %427 = vmatprep.subr.bf16.mxu0 0
    %428 = vmatpush1.bf16.msra.mxu0 %v383
    %429 = vmatprep.subr.bf16.mxu0 0
    %430 = vmatpush1.bf16.msra.mxu0 %v384
    %431 = vmatprep.subr.bf16.mxu0 0
    %432 = vmatpush1.bf16.msra.mxu0 %v385
    %433 = vmatprep.subr.bf16.mxu0 0
    %434 = vmatpush1.bf16.msra.mxu0 %v386
    %435 = vmatprep.mubr.bf16.mxu0 %v96
    %436 = vmatmul.mubr.bf16.gmra.mrb[0].mxu0 %v95
    %v437 = vpop.f32.mrb[0].mxu0
    %v438 = vadd.f32 %v306, %v437
    %v439 = vpop.f32.mrb[0].mxu0
    %v440 = vpop.f32.mrb[0].mxu0
    %v441 = vpop.f32.mrb[0].mxu0
    %442 = vdwg.mxu0
    %v443 = vmul.f32 %v265, %v438
    %v444 = vpack.c.bf16 %v443, %v443
    %v445 = vld [vmem:[#allocation10] sm:$0xf]
    %v446 = vld [vmem:[#allocation10 + $0x4] sm:$0xf]
    %v447 = vld [vmem:[#allocation10 + $0x8] sm:$0xf]
    %v448 = vld [vmem:[#allocation10 + $0xc] sm:$0xf]
    %v449 = vld [vmem:[#allocation10 + $0x10] sm:$0xf]
    %v450 = vld [vmem:[#allocation10 + $0x14] sm:$0xf]
    %v451 = vld [vmem:[#allocation10 + $0x18] sm:$0xf]
    %v452 = vld [vmem:[#allocation10 + $0x1c] sm:$0xf]
    %v453 = vld [vmem:[#allocation10 + $0x20] sm:$0xf]
    %v454 = vld [vmem:[#allocation10 + $0x24] sm:$0xf]
    %v455 = vld [vmem:[#allocation10 + $0x28] sm:$0xf]
    %v456 = vld [vmem:[#allocation10 + $0x2c] sm:$0xf]
    %v457 = vld [vmem:[#allocation10 + $0x30] sm:$0xf]
    %v458 = vld [vmem:[#allocation10 + $0x34] sm:$0xf]
    %v459 = vld [vmem:[#allocation10 + $0x38] sm:$0xf]
    %v460 = vld [vmem:[#allocation10 + $0x3c] sm:$0xf]
    %v461 = vld [vmem:[%s5 + $0x2] sm:$0x1]
    %v462 = vlaneseq
    %v463 = vshrl.u32 %v462, 7
    %v464 = vsub.s32 0, %v463
    %v465 = vrot.slane %v461, %v464
    %v482 = vunpack.c.l.b16 %v445
    %v483 = vunpack.c.l.b16 %v446
    %v484 = vunpack.c.l.b16 %v447
    %v485 = vunpack.c.l.b16 %v448
    %v486 = vunpack.c.l.b16 %v449
    %v487 = vunpack.c.l.b16 %v450
    %v488 = vunpack.c.l.b16 %v451
    %v489 = vunpack.c.l.b16 %v452
    %v490 = vunpack.c.l.b16 %v453
    %v491 = vunpack.c.l.b16 %v454
    %v492 = vunpack.c.l.b16 %v455
    %v493 = vunpack.c.l.b16 %v456
    %v494 = vunpack.c.l.b16 %v457
    %v495 = vunpack.c.l.b16 %v458
    %v496 = vunpack.c.l.b16 %v459
    %v497 = vunpack.c.l.b16 %v460
    %v498 = vpack.c.b16 %v483, %v482
    %v499 = vpack.c.b16 %v485, %v484
    %v500 = vpack.c.b16 %v487, %v486
    %v501 = vpack.c.b16 %v489, %v488
    %v502 = vpack.c.b16 %v491, %v490
    %v503 = vpack.c.b16 %v493, %v492
    %v504 = vpack.c.b16 %v495, %v494
    %v505 = vpack.c.b16 %v497, %v496
    %514 = vmatprep.subr.bf16.mxu0 0
    %515 = vmatpush1.bf16.msra.mxu0 %v498
    %516 = vmatprep.subr.bf16.mxu0 0
    %517 = vmatpush1.bf16.msra.mxu0 %v499
    %518 = vmatprep.subr.bf16.mxu0 0
    %519 = vmatpush1.bf16.msra.mxu0 %v500
    %520 = vmatprep.subr.bf16.mxu0 0
    %521 = vmatpush1.bf16.msra.mxu0 %v501
    %522 = vmatprep.subr.bf16.mxu0 0
    %523 = vmatpush1.bf16.msra.mxu0 %v502
    %524 = vmatprep.subr.bf16.mxu0 0
    %525 = vmatpush1.bf16.msra.mxu0 %v503
    %526 = vmatprep.subr.bf16.mxu0 0
    %527 = vmatpush1.bf16.msra.mxu0 %v504
    %528 = vmatprep.subr.bf16.mxu0 0
    %529 = vmatpush1.bf16.msra.mxu0 %v505
    %530 = vmatprep.subr.bf16.mxu0 0
    %531 = vmatpush1.bf16.msra.mxu0 0
    %532 = vmatprep.subr.bf16.mxu0 0
    %533 = vmatpush1.bf16.msra.mxu0 0
    %534 = vmatprep.subr.bf16.mxu0 0
    %535 = vmatpush1.bf16.msra.mxu0 0
    %536 = vmatprep.subr.bf16.mxu0 0
    %537 = vmatpush1.bf16.msra.mxu0 0
    %538 = vmatprep.subr.bf16.mxu0 0
    %539 = vmatpush1.bf16.msra.mxu0 0
    %540 = vmatprep.subr.bf16.mxu0 0
    %541 = vmatpush1.bf16.msra.mxu0 0
    %542 = vmatprep.subr.bf16.mxu0 0
    %543 = vmatpush1.bf16.msra.mxu0 0
    %544 = vmatprep.subr.bf16.mxu0 0
    %545 = vmatpush1.bf16.msra.mxu0 0
    %546 = vmatprep.mubr.bf16.mxu0 0
    %547 = vmatmul.mubr.bf16.gmra.mrb[0].mxu0 %v444
    %v548 = vpop.f32.mrb[0].mxu0
    %v549 = vadd.f32 %v465, %v548
    %v550 = vpop.f32.mrb[0].mxu0
    %v551 = vpop.f32.mrb[0].mxu0
    %v552 = vpop.f32.mrb[0].mxu0
    %553 = vdwg.mxu0
    %554 = vst [vmem:[#allocation11] sm:$0xff] %v549
    // Predicated region
    $region46: #{tpu_custom_call.1} parent=1 // pred_check
      _
    $region47: #{tpu_custom_call.1} parent=1 // pred_check_branch
      %556 = sbr.rel (0) target = $region49
    $region48: #{tpu_custom_call.1} parent=1 // pred_region
      %s558 = ssub.s32 128, 128
      %559 = vsyncadd [#allocation4], %s558
      %s561 = sshll.u32 [#allocation11], 4
      %s562 = int_to_ptr.vmem [resolvable:$true] %s561
      %564 = dma.vmem_to_hbm [thread:$0]  %s562, 128, %s6, [#allocation4]
    $region49: #{tpu_custom_call.1} parent=1 // pred_fallthru
      _
    // Predicated region
    $region50: #{tpu_custom_call.1} parent=1 // pred_check
      _
    $region51: #{tpu_custom_call.1} parent=1 // pred_check_branch
      %566 = sbr.rel (0) target = $region53
    $region52: #{tpu_custom_call.1} parent=1 // pred_region
      %567 = dma.done [#allocation4], 128
    $region53: #{tpu_custom_call.1} parent=1 // pred_fallthru
      _
    %568 = vsyncpa [#allocation3], 1
    %569 = vsyncpa [#allocation6], 1
    %570 = vsyncpa [#allocation9], 1
    %571 = vsyncpa [#allocation4], 1

</llo_original>
